<compile_context>
chip_gen: v5e
topology: v5e:2x2
jax: 0.10.0
libtpu: 0.0.40
codegen_flags: <defaults>
</compile_context>

<pallas_src>
import jax
import jax.numpy as jnp
from jax.experimental import pallas as pl
from jax.experimental.pallas import tpu as pltpu

# ---- module hyper-parameters (match the nn.Module) ---------------------------
IN_OUT_DIM = 2
HIDDEN_DIM = 32
WIDTH = 64
BLOCKSIZE = WIDTH * IN_OUT_DIM            # 128
OUT_DIM = 3 * BLOCKSIZE + WIDTH           # 448 (real fc3 output)
OUT_PAD = 512                             # fc3 output padded to lane multiple
SLAB = 3 * BLOCKSIZE                      # 384-wide output slab [W|Ugated|B+pad]

H = HIDDEN_DIM
# Row layout of the packed parameter buffer (PROWS, OUT_PAD):
ROW_W2 = 0                # rows [0,32)  cols [0,32)    : fc2 weight^T
ROW_W3 = H                # rows [32,64) cols [0,512)   : fc3 weight^T (padded)
ROW_W1 = 2 * H            # row  64      cols [0,32)    : fc1 weight^T
ROW_B1 = 2 * H + 1        # row  65      cols [0,32)    : fc1 bias
ROW_B2 = 2 * H + 2        # row  66      cols [0,32)    : fc2 bias
ROW_B3 = 2 * H + 3        # row  67      cols [0,512)   : fc3 bias (padded)
PROWS = 2 * H + 8         # 72 rows (multiple of 8 sublanes)

TB = 8                    # batch tile (sublane) size for the batched kernel
PACKED_BYTES = PROWS * OUT_PAD * 4


# ------------------------------------------------------------------------------
# Kernel bodies
# ------------------------------------------------------------------------------
def _fc23_and_store(h1, p_ref, out_ref):
    """fc2 -> tanh -> fc3 -> gate, storing the (M, 384) output slab."""
    w2 = p_ref[ROW_W2:ROW_W2 + H, 0:H]            # (32, 32)
    b2 = p_ref[ROW_B2:ROW_B2 + 1, 0:H]            # (1, 32)
    w3 = p_ref[ROW_W3:ROW_W3 + H, :]              # (32, 512)
    b3 = p_ref[ROW_B3:ROW_B3 + 1, :]              # (1, 512)

    h2 = jnp.tanh(jnp.dot(h1, w2, preferred_element_type=jnp.float32) + b2)
    params = jnp.dot(h2, w3, preferred_element_type=jnp.float32) + b3   # (M, 512)

    w_slab = params[:, 0:BLOCKSIZE]
    u_slab = params[:, BLOCKSIZE:2 * BLOCKSIZE]
    g_slab = params[:, 2 * BLOCKSIZE:3 * BLOCKSIZE]
    tail = params[:, 3 * BLOCKSIZE:OUT_PAD]       # B (64 lanes) + zero pad (64)

    # Three 128-lane-aligned, unmasked stores into the single output buffer.
    out_ref[:, 0:BLOCKSIZE] = w_slab
    out_ref[:, BLOCKSIZE:2 * BLOCKSIZE] = u_slab * jax.nn.sigmoid(g_slab)
    out_ref[:, 2 * BLOCKSIZE:SLAB] = tail


def _hyper_kernel_scalar(t_ref, p_ref, out_ref):
    """t_ref: (1,1) SMEM scalar; p_ref: (72,512) VMEM; out_ref: (1,384) VMEM."""
    t = t_ref[0, 0]                               # scalar from SMEM
    w1 = p_ref[ROW_W1:ROW_W1 + 1, 0:H]            # (1, 32)
    b1 = p_ref[ROW_B1:ROW_B1 + 1, 0:H]            # (1, 32)
    h1 = jnp.tanh(t * w1 + b1)                    # fc1 (K=1) on the VPU
    _fc23_and_store(h1, p_ref, out_ref)


def _hyper_kernel_batched(t_ref, p_ref, out_ref):
    """t_ref: (TB,1) VMEM; p_ref: (72,512) VMEM; out_ref: (TB,384) VMEM."""
    t_col = t_ref[...]                            # (TB, 1)
    w1 = p_ref[ROW_W1:ROW_W1 + 1, 0:H]            # (1, 32)
    b1 = p_ref[ROW_B1:ROW_B1 + 1, 0:H]            # (1, 32)
    h1 = jnp.tanh(t_col * w1 + b1)                # (TB, 32)
    _fc23_and_store(h1, p_ref, out_ref)


# ------------------------------------------------------------------------------
# Host-side parameter packing
# ------------------------------------------------------------------------------
def pack_params(w1t, b1, w2t, b2, w3t, b3):
    """Pack all linear parameters into one padded (72, 512) f32 buffer."""
    packed = jnp.zeros((PROWS, OUT_PAD), jnp.float32)
    packed = packed.at[ROW_W2:ROW_W2 + H, 0:H].set(w2t.astype(jnp.float32))
    packed = packed.at[ROW_W3:ROW_W3 + H, 0:OUT_DIM].set(w3t.astype(jnp.float32))
    packed = packed.at[ROW_W1, 0:H].set(w1t.reshape(H).astype(jnp.float32))
    packed = packed.at[ROW_B1, 0:H].set(b1.reshape(H).astype(jnp.float32))
    packed = packed.at[ROW_B2, 0:H].set(b2.reshape(H).astype(jnp.float32))
    packed = packed.at[ROW_B3, 0:OUT_DIM].set(b3.reshape(OUT_DIM).astype(jnp.float32))
    return packed


def _slab_to_outputs(slab):
    """Free slices/reshapes from the (..., 384) slab to PyTorch output shapes."""
    lead = slab.shape[:-1]
    W = slab[..., 0:BLOCKSIZE].reshape(*lead, WIDTH, IN_OUT_DIM, 1)
    U = slab[..., BLOCKSIZE:2 * BLOCKSIZE].reshape(*lead, WIDTH, 1, IN_OUT_DIM)
    B = slab[..., 2 * BLOCKSIZE:2 * BLOCKSIZE + WIDTH].reshape(*lead, WIDTH, 1, 1)
    return W, B, U


# ------------------------------------------------------------------------------
# Wrappers
# ------------------------------------------------------------------------------
def hypernetwork_forward(t, packed):
    """Scalar-t forward, exactly matching the PyTorch module semantics."""
    t2 = jnp.asarray(t, jnp.float32).reshape(1, 1)
    cost = pl.CostEstimate(
        flops=2 * (H * H + H * OUT_PAD),
        transcendentals=2 * H + BLOCKSIZE,
        bytes_accessed=PACKED_BYTES + 4 + SLAB * 4,
    )
    slab = pl.pallas_call(
        _hyper_kernel_scalar,
        out_shape=jax.ShapeDtypeStruct((1, SLAB), jnp.float32),
        in_specs=[
            pl.BlockSpec(memory_space=pltpu.MemorySpace.SMEM),   # t
            pl.BlockSpec(memory_space=pltpu.MemorySpace.VMEM),   # packed params
        ],
        out_specs=pl.BlockSpec(memory_space=pltpu.MemorySpace.VMEM),
        cost_estimate=cost,
    )(t2, packed)
    W, B, U = _slab_to_outputs(slab[0])
    return [W, B, U]


def hypernetwork_forward_batched(ts, packed):
    """Batched forward for many time values (e.g. ODE-solver stages).

    ts: shape (B,). Returns [W, B, U] with a leading batch dim:
        W: (B, width, in_out_dim, 1), B: (B, width, 1, 1), U: (B, width, 1, in_out_dim).
    """
    ts = jnp.asarray(ts, jnp.float32).reshape(-1)
    bsz = ts.shape[0]
    bpad = ((bsz + TB - 1) // TB) * TB
    t2 = jnp.zeros((bpad, 1), jnp.float32).at[:bsz, 0].set(ts)
    nb = bpad // TB
    cost = pl.CostEstimate(
        flops=2 * bpad * (H * H + H * OUT_PAD),
        transcendentals=bpad * (2 * H + BLOCKSIZE),
        bytes_accessed=PACKED_BYTES + bpad * 4 + bpad * SLAB * 4,
    )
    slab = pl.pallas_call(
        _hyper_kernel_batched,
        out_shape=jax.ShapeDtypeStruct((bpad, SLAB), jnp.float32),
        grid=(nb,),
        in_specs=[
            pl.BlockSpec((TB, 1), lambda i: (i, 0)),             # t tile
            pl.BlockSpec((PROWS, OUT_PAD), lambda i: (0, 0)),    # params (resident)
        ],
        out_specs=pl.BlockSpec((TB, SLAB), lambda i: (i, 0)),
        compiler_params=pltpu.CompilerParams(dimension_semantics=("parallel",)),
        cost_estimate=cost,
    )(t2, packed)
    W, B, U = _slab_to_outputs(slab[:bsz])
    return [W, B, U]


# ------------------------------------------------------------------------------
# Pure-JAX reference (mirrors the PyTorch forward, unpadded weights)
# ------------------------------------------------------------------------------
def _reference_forward(t, w1t, b1, w2t, b2, w3t, b3):
    p = jnp.asarray(t, jnp.float32).reshape(1, 1)
    p = jnp.tanh(p @ w1t + b1)
    p = jnp.tanh(p @ w2t + b2)
    p = (p @ w3t + b3).reshape(-1)
    W = p[:BLOCKSIZE].reshape(WIDTH, IN_OUT_DIM, 1)
    U = p[BLOCKSIZE:2 * BLOCKSIZE].reshape(WIDTH, 1, IN_OUT_DIM)
    G = p[2 * BLOCKSIZE:3 * BLOCKSIZE].reshape(WIDTH, 1, IN_OUT_DIM)
    U = U * jax.nn.sigmoid(G)
    B = p[3 * BLOCKSIZE:].reshape(WIDTH, 1, 1)
    return [W, B, U]


def _init_params(key):
    """Deterministic init mimicking nn.Linear default U(-1/sqrt(fan_in), +)."""
    ks = jax.random.split(key, 6)

    def lin(kw, kb, fan_in, fan_out):
        bound = 1.0 / jnp.sqrt(jnp.float32(fan_in))
        wt = jax.random.uniform(kw, (fan_in, fan_out), jnp.float32, -bound, bound)
        b = jax.random.uniform(kb, (1, fan_out), jnp.float32, -bound, bound)
        return wt, b

    w1t, b1 = lin(ks[0], ks[1], 1, HIDDEN_DIM)
    w2t, b2 = lin(ks[2], ks[3], HIDDEN_DIM, HIDDEN_DIM)
    w3t, b3 = lin(ks[4], ks[5], HIDDEN_DIM, OUT_DIM)
    return w1t, b1, w2t, b2, w3t, b3


if __name__ == "__main__":
    key = jax.random.PRNGKey(0)
    k_param, k_t = jax.random.split(key)

    params = _init_params(k_param)
    packed = pack_params(*params)

    # --- scalar-t path (exact module semantics) ---
    t = jax.random.uniform(k_t, (), jnp.float32)
    W, B, U = hypernetwork_forward(t, packed)
    jax.block_until_ready((W, B, U))

    W_ref, B_ref, U_ref = _reference_forward(t, *params)
    assert W.shape == (WIDTH, IN_OUT_DIM, 1)
    assert B.shape == (WIDTH, 1, 1)
    assert U.shape == (WIDTH, 1, IN_OUT_DIM)
    assert jnp.allclose(W, W_ref, atol=1e-5, rtol=1e-5)
    assert jnp.allclose(B, B_ref, atol=1e-5, rtol=1e-5)
    assert jnp.allclose(U, U_ref, atol=1e-5, rtol=1e-5)

    # --- batched-t path (amortizes launch + weight DMA across ODE stages) ---
    ts = jax.random.uniform(k_t, (5,), jnp.float32)
    Wb, Bb, Ub = hypernetwork_forward_batched(ts, packed)
    jax.block_until_ready((Wb, Bb, Ub))
    assert Wb.shape == (5, WIDTH, IN_OUT_DIM, 1)
    assert Bb.shape == (5, WIDTH, 1, 1)
    assert Ub.shape == (5, WIDTH, 1, IN_OUT_DIM)
    for i in range(5):
        Wi, Bi, Ui = _reference_forward(ts[i], *params)
        assert jnp.allclose(Wb[i], Wi, atol=1e-5, rtol=1e-5)
        assert jnp.allclose(Bb[i], Bi, atol=1e-5, rtol=1e-5)
        assert jnp.allclose(Ub[i], Ui, atol=1e-5, rtol=1e-5)

    print("KERNEL_OK")
</pallas_src>

<mosaic_0001>
module attributes {stable_mosaic.version = 11 : i64} {
  func.func @_hyper_kernel_scalar(%arg0: memref<1x1xf32, #tpu.memory_space<smem>>, %arg1: memref<72x512xf32, #tpu.memory_space<vmem>>, %arg2: memref<1x384xf32, #tpu.memory_space<vmem>>) attributes {dimension_semantics = [], scalar_prefetch = 0 : i64, scratch_operands = 0 : i64, tpu.core_type = #tpu.core_type<tc>} {
    %c0 = arith.constant 0 : index
    %c0_0 = arith.constant 0 : index
    %0 = memref.load %arg0[%c0, %c0_0] : memref<1x1xf32, #tpu.memory_space<smem>>
    %c64 = arith.constant 64 : index
    %c0_1 = arith.constant 0 : index
    %1 = vector.load %arg1[%c64, %c0_1] : memref<72x512xf32, #tpu.memory_space<vmem>>, vector<1x32xf32>
    %c65 = arith.constant 65 : index
    %c0_2 = arith.constant 0 : index
    %2 = vector.load %arg1[%c65, %c0_2] : memref<72x512xf32, #tpu.memory_space<vmem>>, vector<1x32xf32>
    %3 = vector.broadcast %0 : f32 to vector<1x32xf32>
    %4 = arith.mulf %3, %1 : vector<1x32xf32>
    %5 = arith.addf %4, %2 : vector<1x32xf32>
    %6 = math.tanh %5 : vector<1x32xf32>
    %c0_3 = arith.constant 0 : index
    %c0_4 = arith.constant 0 : index
    %7 = vector.load %arg1[%c0_3, %c0_4] : memref<72x512xf32, #tpu.memory_space<vmem>>, vector<32x32xf32>
    %c66 = arith.constant 66 : index
    %c0_5 = arith.constant 0 : index
    %8 = vector.load %arg1[%c66, %c0_5] : memref<72x512xf32, #tpu.memory_space<vmem>>, vector<1x32xf32>
    %c32 = arith.constant 32 : index
    %c0_6 = arith.constant 0 : index
    %9 = vector.load %arg1[%c32, %c0_6] : memref<72x512xf32, #tpu.memory_space<vmem>>, vector<32x512xf32>
    %c67 = arith.constant 67 : index
    %c0_7 = arith.constant 0 : index
    %10 = vector.load %arg1[%c67, %c0_7] : memref<72x512xf32, #tpu.memory_space<vmem>>, vector<1x512xf32>
    %cst = arith.constant dense<0.000000e+00> : vector<1x32xf32>
    %11 = tpu.matmul %6, %7, %cst {dimension_numbers = #tpu.dot_dimension_numbers<[1], [0], [0], [1], [0, 0, 1, 1], [], []>} : vector<1x32xf32>, vector<32x32xf32>, vector<1x32xf32> -> vector<1x32xf32>
    %12 = arith.addf %11, %8 : vector<1x32xf32>
    %13 = math.tanh %12 : vector<1x32xf32>
    %cst_8 = arith.constant dense<0.000000e+00> : vector<1x512xf32>
    %14 = tpu.matmul %13, %9, %cst_8 {dimension_numbers = #tpu.dot_dimension_numbers<[1], [0], [0], [1], [0, 0, 1, 1], [], []>} : vector<1x32xf32>, vector<32x512xf32>, vector<1x512xf32> -> vector<1x512xf32>
    %15 = arith.addf %14, %10 : vector<1x512xf32>
    %16 = vector.extract_strided_slice %15 {offsets = [0, 0], sizes = [1, 128], strides = [1, 1]} : vector<1x512xf32> to vector<1x128xf32>
    %17 = vector.extract_strided_slice %15 {offsets = [0, 128], sizes = [1, 128], strides = [1, 1]} : vector<1x512xf32> to vector<1x128xf32>
    %18 = vector.extract_strided_slice %15 {offsets = [0, 256], sizes = [1, 128], strides = [1, 1]} : vector<1x512xf32> to vector<1x128xf32>
    %19 = vector.extract_strided_slice %15 {offsets = [0, 384], sizes = [1, 128], strides = [1, 1]} : vector<1x512xf32> to vector<1x128xf32>
    %c0_9 = arith.constant 0 : index
    %c0_10 = arith.constant 0 : index
    %20 = vector.load %arg2[%c0_9, %c0_10] : memref<1x384xf32, #tpu.memory_space<vmem>>, vector<1x128xf32>
    tpu.vector_store %arg2[%c0_9, %c0_10], %16 {strides = array<i32>} : memref<1x384xf32, #tpu.memory_space<vmem>>, vector<1x128xf32>,
    %21 = arith.negf %18 : vector<1x128xf32>
    %22 = math.exp %21 : vector<1x128xf32>
    %cst_11 = arith.constant 1.000000e+00 : f32
    %23 = vector.broadcast %cst_11 : f32 to vector<1x128xf32>
    %24 = arith.addf %23, %22 : vector<1x128xf32>
    %25 = arith.divf %23, %24 : vector<1x128xf32>
    %26 = arith.mulf %17, %25 : vector<1x128xf32>
    %c0_12 = arith.constant 0 : index
    %c128 = arith.constant 128 : index
    %27 = vector.load %arg2[%c0_12, %c128] : memref<1x384xf32, #tpu.memory_space<vmem>>, vector<1x128xf32>
    tpu.vector_store %arg2[%c0_12, %c128], %26 {strides = array<i32>} : memref<1x384xf32, #tpu.memory_space<vmem>>, vector<1x128xf32>,
    %c0_13 = arith.constant 0 : index
    %c256 = arith.constant 256 : index
    %28 = vector.load %arg2[%c0_13, %c256] : memref<1x384xf32, #tpu.memory_space<vmem>>, vector<1x128xf32>
    tpu.vector_store %arg2[%c0_13, %c256], %19 {strides = array<i32>} : memref<1x384xf32, #tpu.memory_space<vmem>>, vector<1x128xf32>,
    return
  }
}

</mosaic_0001>

<llo_original>
// kernel: tpu_custom_call.1
$region0: #{tpu_custom_call.1}
  #allocation0 [shape = 'u32[]', space=smem, size = 0x4, offset = 0x4, fixed_abs, tag = 'smem constant byte address 0x4 - core index']
  #allocation1 [shape = 'u32[72,128]{1,0:T(1,128)}', space=vmem, size = 0x9000, scoped, tag = 'internal scratch']
  #allocation2 [shape = 'f32[1,1]{1,0:T(1,128)S(6)}', space=smem, size = 0x200, scoped, tag = 'scoped memory for tpu_custom_call.1']
  %s0 = inlined_call_operand.<no memory space> [shape: f32[1,1], index: 0, kind: input, shape index: {}]
  %s1 = inlined_call_operand.hbm [shape: f32[72,512], index: 1, kind: input, shape index: {}]
  %s2 = inlined_call_operand.hbm [shape: f32[1,384], index: 2, kind: output, shape index: {}]
  %s3 = sld [smem:[#allocation0]]
  $region22: #{tpu_custom_call.1} parent=0
    _
  %s5 = ssub.s32 1, %s3
  %s6 = scalar_select 0, %s5, %s3
  %7 = sst [smem:[#allocation2]] %s0
  $region1: #{tpu_custom_call.1} parent=0
    #allocation3 [shape = 'u8[147456]{0}', space=vmem, size = 0x24000, scoped, tag = 'input window, operand 1, single buffered']
    #allocation4 [shape = 's32[1]{0}', space=sflag, size = 0x4, scoped, tag = 'scoped memory for tpu_custom_call.1']
    #allocation5 [shape = 's32[1]{0}', space=sflag, size = 0x4, scoped, tag = 'scoped memory for tpu_custom_call.1']
    #allocation6 [shape = 'u8[1536]{0}', space=vmem, size = 0x800, scoped, tag = 'output window, operand 0, single buffered']
    %8 = vsyncpa [#allocation4], 0
    %9 = vsyncpa [#allocation5], 0
    // Predicated region
    $region2: #{tpu_custom_call.1} parent=1 // pred_check
      _
    $region3: #{tpu_custom_call.1} parent=1 // pred_check_branch
      %11 = sbr.rel (0) target = $region5
    $region4: #{tpu_custom_call.1} parent=1 // pred_region
      _
    $region5: #{tpu_custom_call.1} parent=1 // pred_fallthru
      _
    // Predicated region
    $region6: #{tpu_custom_call.1} parent=1 // pred_check
      _
    $region7: #{tpu_custom_call.1} parent=1 // pred_check_branch
      %13 = sbr.rel (0) target = $region9
    $region8: #{tpu_custom_call.1} parent=1 // pred_region
      %15 = vsyncadd [#allocation4], 0
      %s16 = sshll.u32 %s1, 4
      %s17 = int_to_ptr.hbm [resolvable:$true] %s16
      %s18 = sshll.u32 [#allocation3], 4
      %s19 = int_to_ptr.vmem [resolvable:$true] %s18
      %24 = dma.hbm_to_vmem [thread:$0]  %s17, 4608, %s19, [#allocation4], 512, 512, 32
    $region9: #{tpu_custom_call.1} parent=1 // pred_fallthru
      _
    // Predicated region
    $region10: #{tpu_custom_call.1} parent=1 // pred_check
      _
    $region11: #{tpu_custom_call.1} parent=1 // pred_check_branch
      %26 = sbr.rel (0) target = $region13
    $region12: #{tpu_custom_call.1} parent=1 // pred_region
      %28 = dma.done [#allocation4], 4608
    $region13: #{tpu_custom_call.1} parent=1 // pred_fallthru
      _
    %s29 = sld [smem:[#allocation2]]
    %v30 = vld [vmem:[#allocation3 + $0x100] ss:$0 sm:$0xff]
    %v31 = vld [vmem:[#allocation3 + $0x101] ss:$0 sm:$0xff]
    %v32 = vstv %s29
    %v33 = vmul.f32 %v32, %v30
    %v34 = vadd.f32 %v33, %v31
    %v35 = vtanh.pop %v34
    %v36 = vld [vmem:[#allocation3] sm:$0xff]
    %v37 = vld [vmem:[#allocation3 + $0x20] sm:$0xff]
    %v38 = vld [vmem:[#allocation3 + $0x40] sm:$0xff]
    %v39 = vld [vmem:[#allocation3 + $0x60] sm:$0xff]
    %v40 = vld [vmem:[#allocation3 + $0x102] ss:$0 sm:$0xff]
    %v41 = vld [vmem:[#allocation3 + $0x80] sm:$0xff]
    %v42 = vld [vmem:[#allocation3 + $0x88] sm:$0xff]
    %v43 = vld [vmem:[#allocation3 + $0x90] sm:$0xff]
    %v44 = vld [vmem:[#allocation3 + $0x98] sm:$0xff]
    %v45 = vld [vmem:[#allocation3 + $0xa0] sm:$0xff]
    %v46 = vld [vmem:[#allocation3 + $0xa8] sm:$0xff]
    %v47 = vld [vmem:[#allocation3 + $0xb0] sm:$0xff]
    %v48 = vld [vmem:[#allocation3 + $0xb8] sm:$0xff]
    %v49 = vld [vmem:[#allocation3 + $0xc0] sm:$0xff]
    %v50 = vld [vmem:[#allocation3 + $0xc8] sm:$0xff]
    %v51 = vld [vmem:[#allocation3 + $0xd0] sm:$0xff]
    %v52 = vld [vmem:[#allocation3 + $0xd8] sm:$0xff]
    %v53 = vld [vmem:[#allocation3 + $0xe0] sm:$0xff]
    %v54 = vld [vmem:[#allocation3 + $0xe8] sm:$0xff]
    %v55 = vld [vmem:[#allocation3 + $0xf0] sm:$0xff]
    %v56 = vld [vmem:[#allocation3 + $0xf8] sm:$0xff]
    %s57 = scalar_lea.vmem [#allocation3], 259
    %v58 = vld [vmem:[%s57] ss:$8 sm:$0xf]
    %vm59 = vcmask 261120
    %v61 = vsel %vm59, %v35, 0
    %63 = vmatpush.msra.mxu0 0.0
    %64 = vmatpush.msra.mxu0 0.0
    %65 = vmatpush.msra.mxu0 0.0
    %66 = vmatpush.msra.mxu0 0.0
    %67 = vmatpush.msra.mxu0 0.0
    %68 = vmatpush.msra.mxu0 0.0
    %69 = vmatpush.msra.mxu0 0.0
    %70 = vmatpush.msra.mxu0 0.0
    %71 = vmatpush.msra.mxu0 0.0
    %72 = vmatpush.msra.mxu0 0.0
    %73 = vmatpush.msra.mxu0 0.0
    %74 = vmatpush.msra.mxu0 0.0
    %75 = vmatpush.msra.mxu0 %v39
    %76 = vmatpush.msra.mxu0 %v38
    %77 = vmatpush.msra.mxu0 %v37
    %78 = vmatpush.msra.mxu0 %v36
    %79 = vmatmul.f32.gmra.mxu0 %v61
    %v80 = vpop.f32.mrf.mxu0
    %v81 = vadd.f32 %v40, %v80
    %82 = vdwg.mxu0
    %v83 = vtanh.pop %v81
    %v85 = vperm.slane %v58, 0
    %v86 = vperm.slane %v58, 1
    %v87 = vperm.slane %v58, 2
    %v88 = vperm.slane %v58, 3
    %v94 = vsel %vm59, %v83, 0
    %96 = vmatpush.msra.mxu0 0.0
    %97 = vmatpush.msra.mxu0 0.0
    %98 = vmatpush.msra.mxu0 0.0
    %99 = vmatpush.msra.mxu0 0.0
    %100 = vmatpush.msra.mxu0 0.0
    %101 = vmatpush.msra.mxu0 0.0
    %102 = vmatpush.msra.mxu0 0.0
    %103 = vmatpush.msra.mxu0 0.0
    %104 = vmatpush.msra.mxu0 0.0
    %105 = vmatpush.msra.mxu0 0.0
    %106 = vmatpush.msra.mxu0 0.0
    %107 = vmatpush.msra.mxu0 0.0
    %108 = vmatpush.msra.mxu0 %v53
    %109 = vmatpush.msra.mxu0 %v49
    %110 = vmatpush.msra.mxu0 %v45
    %111 = vmatpush.msra.mxu0 %v41
    %112 = vmatmul.f32.gmra.mxu0 %v94
    %v113 = vpop.f32.mrf.mxu0
    %v114 = vadd.f32 %v85, %v113
    %115 = vdwg.mxu0
    %116 = vmatpush.msra.mxu0 0.0
    %117 = vmatpush.msra.mxu0 0.0
    %118 = vmatpush.msra.mxu0 0.0
    %119 = vmatpush.msra.mxu0 0.0
    %120 = vmatpush.msra.mxu0 0.0
    %121 = vmatpush.msra.mxu0 0.0
    %122 = vmatpush.msra.mxu0 0.0
    %123 = vmatpush.msra.mxu0 0.0
    %124 = vmatpush.msra.mxu0 0.0
    %125 = vmatpush.msra.mxu0 0.0
    %126 = vmatpush.msra.mxu0 0.0
    %127 = vmatpush.msra.mxu0 0.0
    %128 = vmatpush.msra.mxu0 %v54
    %129 = vmatpush.msra.mxu0 %v50
    %130 = vmatpush.msra.mxu0 %v46
    %131 = vmatpush.msra.mxu0 %v42
    %132 = vmatmul.f32.gmra.mxu0 %v94
    %v133 = vpop.f32.mrf.mxu0
    %v134 = vadd.f32 %v86, %v133
    %135 = vdwg.mxu0
    %136 = vmatpush.msra.mxu0 0.0
    %137 = vmatpush.msra.mxu0 0.0
    %138 = vmatpush.msra.mxu0 0.0
    %139 = vmatpush.msra.mxu0 0.0
    %140 = vmatpush.msra.mxu0 0.0
    %141 = vmatpush.msra.mxu0 0.0
    %142 = vmatpush.msra.mxu0 0.0
    %143 = vmatpush.msra.mxu0 0.0
    %144 = vmatpush.msra.mxu0 0.0
    %145 = vmatpush.msra.mxu0 0.0
    %146 = vmatpush.msra.mxu0 0.0
    %147 = vmatpush.msra.mxu0 0.0
    %148 = vmatpush.msra.mxu0 %v55
    %149 = vmatpush.msra.mxu0 %v51
    %150 = vmatpush.msra.mxu0 %v47
    %151 = vmatpush.msra.mxu0 %v43
    %152 = vmatmul.f32.gmra.mxu0 %v94
    %v153 = vpop.f32.mrf.mxu0
    %v154 = vadd.f32 %v87, %v153
    %155 = vdwg.mxu0
    %156 = vmatpush.msra.mxu0 0.0
    %157 = vmatpush.msra.mxu0 0.0
    %158 = vmatpush.msra.mxu0 0.0
    %159 = vmatpush.msra.mxu0 0.0
    %160 = vmatpush.msra.mxu0 0.0
    %161 = vmatpush.msra.mxu0 0.0
    %162 = vmatpush.msra.mxu0 0.0
    %163 = vmatpush.msra.mxu0 0.0
    %164 = vmatpush.msra.mxu0 0.0
    %165 = vmatpush.msra.mxu0 0.0
    %166 = vmatpush.msra.mxu0 0.0
    %167 = vmatpush.msra.mxu0 0.0
    %168 = vmatpush.msra.mxu0 %v56
    %169 = vmatpush.msra.mxu0 %v52
    %170 = vmatpush.msra.mxu0 %v48
    %171 = vmatpush.msra.mxu0 %v44
    %172 = vmatmul.f32.gmra.mxu0 %v94
    %v173 = vpop.f32.mrf.mxu0
    %v174 = vadd.f32 %v88, %v173
    %175 = vdwg.mxu0
    %v176 = vlaneseq
    %vm177 = vcmp.ge.s32.totalorder %v176, 0
    %vm178 = vcmp.lt.s32.totalorder %v176, 128
    %vm179 = vmand %vm177, %vm178
    %180 = vst.msk [vmem:[#allocation6] sm:$0x1] %vm179, %v114
    %v181 = vxor.u32 %v154, 2147483648
    %v182 = vmul.f32 %v181, 1.442695
    %v183 = vpow.pop %v182
    %v184 = vadd.f32 %v183, 1.0
    %v185 = vrcp.pop %v184
    %v186 = vmul.f32 %v184, %v185
    %v187 = vsub.f32 1.0, %v186
    %v188 = vmul.f32 %v185, %v187
    %v189 = vadd.f32 %v185, %v188
    %vm190 = vweird.f32 %v184
    %vm191 = vweird.f32 %v185
    %vm192 = vmor %vm190, %vm191
    %v193 = vsel %vm192, %v185, %v189
    %v194 = vand.u32 2147483647, %v184
    %vm195 = vcmp.eq.f32.partialorder %v194, 8.507059e+37
    %v196 = vand.u32 %v184, 2147483648
    %v197 = vor.u32 1.1754944e-38, %v196
    %v198 = vsel %vm195, %v197, %v193
    %v199 = vmul.f32 1.0, %v198
    %v200 = vmul.f32 %v134, %v199
    %201 = vst.msk [vmem:[#allocation6 + $0x1] sm:$0x1] %vm179, %v200
    %202 = vst.msk [vmem:[#allocation6 + $0x2] sm:$0x1] %vm179, %v174
    // Predicated region
    $region14: #{tpu_custom_call.1} parent=1 // pred_check
      _
    $region15: #{tpu_custom_call.1} parent=1 // pred_check_branch
      %204 = sbr.rel (0) target = $region17
    $region16: #{tpu_custom_call.1} parent=1 // pred_region
      %206 = vsyncadd [#allocation5], 0
      %s208 = sshll.u32 [#allocation6], 4
      %s209 = int_to_ptr.vmem [resolvable:$true] %s208
      %s210 = sshll.u32 %s2, 4
      %s211 = int_to_ptr.hbm [resolvable:$true] %s210
      %213 = dma.vmem_to_hbm [thread:$0]  %s209, 48, %s211, [#allocation5]
    $region17: #{tpu_custom_call.1} parent=1 // pred_fallthru
      _
    // Predicated region
    $region18: #{tpu_custom_call.1} parent=1 // pred_check
      _
    $region19: #{tpu_custom_call.1} parent=1 // pred_check_branch
      %215 = sbr.rel (0) target = $region21
    $region20: #{tpu_custom_call.1} parent=1 // pred_region
      %217 = dma.done [#allocation5], 48
    $region21: #{tpu_custom_call.1} parent=1 // pred_fallthru
      _
    %218 = vsyncpa [#allocation4], 1
    %219 = vsyncpa [#allocation5], 1

</llo_original>
